<compile_context>
chip_gen: v5e
topology: v5e:2x2
jax: 0.10.0
libtpu: 0.0.40
codegen_flags: <defaults>
</compile_context>

<pallas_src>
import functools

import jax
import jax.numpy as jnp
from jax.experimental import pallas as pl
from jax.experimental.pallas import tpu as pltpu


def cal_laplacian(adj: jnp.ndarray) -> jnp.ndarray:
    """Symmetric-normalized (A + I) Laplacian: D^{-1/2} (A + I) D^{-1/2}."""
    n = adj.shape[0]
    a_hat = adj + jnp.eye(n, dtype=adj.dtype)
    deg = jnp.sum(a_hat, axis=-1)
    d_inv_sqrt = jnp.where(deg > 0, 1.0 / jnp.sqrt(deg), 0.0)
    return a_hat * d_inv_sqrt[:, None] * d_inv_sqrt[None, :]


def _round_up(v: int, m: int) -> int:
    return (v + m - 1) // m * m


def _gcn_kernel(lap_ref, x_ref, out_ref, *, k: int):
    """out = (x + L x + L^2 x + ... + L^K x) / (K + 1) for one column block.

    Operands are fed to the MXU in their storage dtype (f32 or bf16); the
    running sum is kept in f32 vregs.  K is a small static constant, so the
    loop is fully unrolled and the K matmuls run back-to-back on the MXU.
    """
    lap = lap_ref[...]                       # (Np, Np), storage dtype
    cur = x_ref[...]                         # (Np, tf), storage dtype
    acc = cur.astype(jnp.float32)            # f32 accumulator
    for _ in range(k):
        nxt = jnp.dot(lap, cur, preferred_element_type=jnp.float32)
        acc = acc + nxt
        cur = nxt.astype(lap.dtype)          # keep MXU operands in bf16/f32
    out_ref[...] = (acc * (1.0 / (k + 1))).astype(out_ref.dtype)


def gcn_forward(laplacian: jnp.ndarray, x: jnp.ndarray, k: int,
                *, tf: int = 128, operand_dtype=None) -> jnp.ndarray:
    """Pallas GCN propagation.  `operand_dtype=jnp.bfloat16` selects the
    peak-throughput MXU path (bf16 operands, f32 accumulation)."""
    n, f = x.shape
    assert laplacian.shape == (n, n)
    assert tf % 128 == 0
    out_dtype = x.dtype
    if operand_dtype is None:
        operand_dtype = x.dtype

    # Lane-dense padding: last dims of every block are multiples of 128.
    n_p = _round_up(n, 128)
    f_p = _round_up(f, tf)
    lap_p = jnp.zeros((n_p, n_p), operand_dtype).at[:n, :n].set(
        laplacian.astype(operand_dtype))
    x_p = jnp.zeros((n_p, f_p), operand_dtype).at[:n, :f].set(
        x.astype(operand_dtype))

    grid = (f_p // tf,)
    item = jnp.dtype(operand_dtype).itemsize
    cost = pl.CostEstimate(
        flops=2 * k * n_p * n_p * f_p,
        transcendentals=0,
        bytes_accessed=n_p * n_p * item + n_p * f_p * item
        + n_p * f_p * jnp.dtype(out_dtype).itemsize,
    )

    kernel = functools.partial(_gcn_kernel, k=k)
    out_p = pl.pallas_call(
        kernel,
        out_shape=jax.ShapeDtypeStruct((n_p, f_p), out_dtype),
        grid_spec=pl.GridSpec(
            grid=grid,
            in_specs=[
                # L: same block for every grid step -> stays VMEM-resident.
                pl.BlockSpec((n_p, n_p), lambda j: (0, 0)),
                # x: independent column blocks of the node signal.
                pl.BlockSpec((n_p, tf), lambda j: (0, j)),
            ],
            out_specs=pl.BlockSpec((n_p, tf), lambda j: (0, j)),
        ),
        compiler_params=pltpu.CompilerParams(
            # Column blocks are independent -> shard across TCs on v7x.
            dimension_semantics=("parallel",),
        ),
        cost_estimate=cost,
    )(lap_p, x_p)

    return out_p[:n, :f]


def gcn_reference(laplacian, x, k):
    s = x
    cur = x
    for _ in range(k):
        cur = laplacian @ cur
        s = s + cur
    return s / (k + 1)


if __name__ == "__main__":
    N = 64   # number of graph nodes
    F = 32   # feature dim of the node signal
    K = 3    # propagation order

    key = jax.random.PRNGKey(0)
    k_adj, k_x = jax.random.split(key)

    # Deterministic synthetic symmetric adjacency (0/1), zero diagonal.
    raw = jax.random.uniform(k_adj, (N, N), dtype=jnp.float32)
    adj = (raw + raw.T > 1.4).astype(jnp.float32)
    adj = adj * (1.0 - jnp.eye(N, dtype=jnp.float32))

    laplacian = cal_laplacian(adj)                          # (N, N) buffer
    x = jax.random.normal(k_x, (N, F), dtype=jnp.float32)   # (N, F) inputs

    ref = gcn_reference(laplacian, x, K)

    # Exact-semantics path (f32 operands, matches the PyTorch module).
    out = gcn_forward(laplacian, x, K)
    jax.block_until_ready(out)
    assert out.shape == (N, F)
    assert jnp.allclose(out, ref, atol=1e-5, rtol=1e-5)

    # Peak-throughput MXU path: bf16 operands (L stored/DMA'd as bf16),
    # f32 accumulation.  Looser tolerance reflects bf16 operand rounding.
    out_bf16 = gcn_forward(laplacian, x, K, operand_dtype=jnp.bfloat16)
    jax.block_until_ready(out_bf16)
    assert out_bf16.shape == (N, F)
    assert jnp.allclose(out_bf16, ref, atol=1e-1, rtol=1e-1)

    print("KERNEL_OK")
</pallas_src>

<mosaic_0001>
module attributes {stable_mosaic.version = 11 : i64} {
  func.func @_gcn_kernel(%arg0: i32, %arg1: memref<128x128xf32, #tpu.memory_space<vmem>>, %arg2: memref<128x128xf32, #tpu.memory_space<vmem>>, %arg3: memref<128x128xf32, #tpu.memory_space<vmem>>) attributes {dimension_semantics = [#tpu.dimension_semantics<parallel>], iteration_bounds = array<i64: 1>, scalar_prefetch = 0 : i64, scratch_operands = 0 : i64, tpu.core_type = #tpu.core_type<tc>, window_params = [{pipeline_mode = #tpu.pipeline_mode<synchronous>, transform_indices = @transform_0, window_bounds = array<i64: 128, 128>}, {transform_indices = @transform_1, window_bounds = array<i64: 128, 128>}, {transform_indices = @transform_2, window_bounds = array<i64: 128, 128>}]} {
    %c0 = arith.constant 0 : index
    %c0_0 = arith.constant 0 : index
    %0 = vector.load %arg1[%c0, %c0_0] : memref<128x128xf32, #tpu.memory_space<vmem>>, vector<128x128xf32>
    %c0_1 = arith.constant 0 : index
    %c0_2 = arith.constant 0 : index
    %1 = vector.load %arg2[%c0_1, %c0_2] : memref<128x128xf32, #tpu.memory_space<vmem>>, vector<128x128xf32>
    %cst = arith.constant dense<0.000000e+00> : vector<128x128xf32>
    %2 = tpu.matmul %0, %1, %cst {dimension_numbers = #tpu.dot_dimension_numbers<[1], [0], [0], [1], [0, 0, 1, 1], [], []>} : vector<128x128xf32>, vector<128x128xf32>, vector<128x128xf32> -> vector<128x128xf32>
    %3 = arith.addf %1, %2 : vector<128x128xf32>
    %cst_3 = arith.constant dense<0.000000e+00> : vector<128x128xf32>
    %4 = tpu.matmul %0, %2, %cst_3 {dimension_numbers = #tpu.dot_dimension_numbers<[1], [0], [0], [1], [0, 0, 1, 1], [], []>} : vector<128x128xf32>, vector<128x128xf32>, vector<128x128xf32> -> vector<128x128xf32>
    %5 = arith.addf %3, %4 : vector<128x128xf32>
    %cst_4 = arith.constant dense<0.000000e+00> : vector<128x128xf32>
    %6 = tpu.matmul %0, %4, %cst_4 {dimension_numbers = #tpu.dot_dimension_numbers<[1], [0], [0], [1], [0, 0, 1, 1], [], []>} : vector<128x128xf32>, vector<128x128xf32>, vector<128x128xf32> -> vector<128x128xf32>
    %7 = arith.addf %5, %6 : vector<128x128xf32>
    %cst_5 = arith.constant 2.500000e-01 : f32
    %8 = vector.broadcast %cst_5 : f32 to vector<128x128xf32>
    %9 = arith.mulf %7, %8 : vector<128x128xf32>
    %c0_6 = arith.constant 0 : index
    %c0_7 = arith.constant 0 : index
    %10 = vector.load %arg3[%c0_6, %c0_7] : memref<128x128xf32, #tpu.memory_space<vmem>>, vector<128x128xf32>
    tpu.vector_store %arg3[%c0_6, %c0_7], %9 {strides = array<i32>} : memref<128x128xf32, #tpu.memory_space<vmem>>, vector<128x128xf32>,
    return
  }
  func.func @transform_0(%arg0: i32) -> (i32, i32) {
    %c0_i32 = arith.constant 0 : i32
    %c0_i32_0 = arith.constant 0 : i32
    %c0_i32_1 = arith.constant 0 : i32
    return %c0_i32, %c0_i32_0 : i32, i32
  }
  func.func @transform_1(%arg0: i32) -> (i32, i32) {
    %c0_i32 = arith.constant 0 : i32
    %c0_i32_0 = arith.constant 0 : i32
    return %c0_i32, %arg0 : i32, i32
  }
  func.func @transform_2(%arg0: i32) -> (i32, i32) {
    %c0_i32 = arith.constant 0 : i32
    %c0_i32_0 = arith.constant 0 : i32
    return %c0_i32, %arg0 : i32, i32
  }
}

</mosaic_0001>

<llo_original>
// kernel: tpu_custom_call.1
$region0: #{tpu_custom_call.1}
  #allocation0 [shape = 'u32[]', space=smem, size = 0x4, offset = 0x4, fixed_abs, tag = 'smem constant byte address 0x4 - core index']
  #allocation1 [shape = 'u32[72,128]{1,0:T(1,128)}', space=vmem, size = 0x9000, scoped, tag = 'internal scratch']
  %s0 = inlined_call_operand.hbm [shape: f32[128,128], index: 0, kind: input, shape index: {}]
  %s1 = inlined_call_operand.hbm [shape: f32[128,128], index: 1, kind: input, shape index: {}]
  %s2 = inlined_call_operand.hbm [shape: f32[128,128], index: 2, kind: output, shape index: {}]
  %s3 = sld [smem:[#allocation0]]
  $region26: #{tpu_custom_call.1} parent=0
    _
  %s5 = ssub.s32 1, %s3
  %s6 = scalar_select 0, %s5, %s3
  $region1: #{tpu_custom_call.1} parent=0
    #allocation2 [shape = 'u8[65536]{0}', space=vmem, size = 0x10000, scoped, tag = 'input window, operand 0, single buffered']
    #allocation3 [shape = 's32[1]{0}', space=sflag, size = 0x4, scoped, tag = 'scoped memory for tpu_custom_call.1']
    #allocation4 [shape = 's32[1]{0}', space=sflag, size = 0x4, scoped, tag = 'scoped memory for tpu_custom_call.1']
    #allocation5 [shape = 'u8[65536]{0}', space=vmem, size = 0x10000, scoped, tag = 'input window, operand 1, single buffered']
    #allocation6 [shape = 's32[1]{0}', space=sflag, size = 0x4, scoped, tag = 'scoped memory for tpu_custom_call.1']
    #allocation7 [shape = 'u8[65536]{0}', space=vmem, size = 0x10000, scoped, tag = 'output window, operand 0, single buffered']
    %7 = vsyncpa [#allocation3], 0
    %8 = vsyncpa [#allocation6], 0
    %9 = vsyncpa [#allocation4], 0
    // Predicated region
    $region2: #{tpu_custom_call.1} parent=1 // pred_check
      _
    $region3: #{tpu_custom_call.1} parent=1 // pred_check_branch
      %11 = sbr.rel (0) target = $region5
    $region4: #{tpu_custom_call.1} parent=1 // pred_region
      %13 = vsyncadd [#allocation3], 0
      %s14 = sshll.u32 %s0, 4
      %s15 = int_to_ptr.hbm [resolvable:$true] %s14
      %s16 = sshll.u32 [#allocation2], 4
      %s17 = int_to_ptr.vmem [resolvable:$true] %s16
      %22 = dma.hbm_to_vmem [thread:$0]  %s15, 2048, %s17, [#allocation3], 128, 128, 8
    $region5: #{tpu_custom_call.1} parent=1 // pred_fallthru
      _
    // Predicated region
    $region6: #{tpu_custom_call.1} parent=1 // pred_check
      _
    $region7: #{tpu_custom_call.1} parent=1 // pred_check_branch
      %24 = sbr.rel (0) target = $region9
    $region8: #{tpu_custom_call.1} parent=1 // pred_region
      %26 = vsyncadd [#allocation6], 0
      %s27 = sshll.u32 %s1, 4
      %s28 = int_to_ptr.hbm [resolvable:$true] %s27
      %s29 = sshll.u32 [#allocation5], 4
      %s30 = int_to_ptr.vmem [resolvable:$true] %s29
      %35 = dma.hbm_to_vmem [thread:$0]  %s28, 2048, %s30, [#allocation6], 128, 128, 8
    $region9: #{tpu_custom_call.1} parent=1 // pred_fallthru
      _
    // Predicated region
    $region10: #{tpu_custom_call.1} parent=1 // pred_check
      _
    $region11: #{tpu_custom_call.1} parent=1 // pred_check_branch
      %37 = sbr.rel (0) target = $region13
    $region12: #{tpu_custom_call.1} parent=1 // pred_region
      %39 = dma.done [#allocation3], 2048
    $region13: #{tpu_custom_call.1} parent=1 // pred_fallthru
      _
    // Predicated region
    $region14: #{tpu_custom_call.1} parent=1 // pred_check
      _
    $region15: #{tpu_custom_call.1} parent=1 // pred_check_branch
      %41 = sbr.rel (0) target = $region17
    $region16: #{tpu_custom_call.1} parent=1 // pred_region
      %43 = dma.done [#allocation6], 2048
    $region17: #{tpu_custom_call.1} parent=1 // pred_fallthru
      _
    %v44 = vld [vmem:[#allocation2] sm:$0xff]
    %v45 = vld [vmem:[#allocation2 + $0x8] sm:$0xff]
    %v46 = vld [vmem:[#allocation2 + $0x10] sm:$0xff]
    %v47 = vld [vmem:[#allocation2 + $0x18] sm:$0xff]
    %v48 = vld [vmem:[#allocation2 + $0x20] sm:$0xff]
    %v49 = vld [vmem:[#allocation2 + $0x28] sm:$0xff]
    %v50 = vld [vmem:[#allocation2 + $0x30] sm:$0xff]
    %v51 = vld [vmem:[#allocation2 + $0x38] sm:$0xff]
    %v52 = vld [vmem:[#allocation2 + $0x40] sm:$0xff]
    %v53 = vld [vmem:[#allocation2 + $0x48] sm:$0xff]
    %v54 = vld [vmem:[#allocation2 + $0x50] sm:$0xff]
    %v55 = vld [vmem:[#allocation2 + $0x58] sm:$0xff]
    %v56 = vld [vmem:[#allocation2 + $0x60] sm:$0xff]
    %v57 = vld [vmem:[#allocation2 + $0x68] sm:$0xff]
    %v58 = vld [vmem:[#allocation2 + $0x70] sm:$0xff]
    %v59 = vld [vmem:[#allocation2 + $0x78] sm:$0xff]
    %v60 = vld [vmem:[#allocation5] sm:$0xff]
    %v61 = vld [vmem:[#allocation5 + $0x8] sm:$0xff]
    %v62 = vld [vmem:[#allocation5 + $0x10] sm:$0xff]
    %v63 = vld [vmem:[#allocation5 + $0x18] sm:$0xff]
    %v64 = vld [vmem:[#allocation5 + $0x20] sm:$0xff]
    %v65 = vld [vmem:[#allocation5 + $0x28] sm:$0xff]
    %v66 = vld [vmem:[#allocation5 + $0x30] sm:$0xff]
    %v67 = vld [vmem:[#allocation5 + $0x38] sm:$0xff]
    %v68 = vld [vmem:[#allocation5 + $0x40] sm:$0xff]
    %v69 = vld [vmem:[#allocation5 + $0x48] sm:$0xff]
    %v70 = vld [vmem:[#allocation5 + $0x50] sm:$0xff]
    %v71 = vld [vmem:[#allocation5 + $0x58] sm:$0xff]
    %v72 = vld [vmem:[#allocation5 + $0x60] sm:$0xff]
    %v73 = vld [vmem:[#allocation5 + $0x68] sm:$0xff]
    %v74 = vld [vmem:[#allocation5 + $0x70] sm:$0xff]
    %v75 = vld [vmem:[#allocation5 + $0x78] sm:$0xff]
    %76 = vmatpush.msra.mxu0 %v75
    %77 = vmatpush.msra.mxu0 %v74
    %78 = vmatpush.msra.mxu0 %v73
    %79 = vmatpush.msra.mxu0 %v72
    %80 = vmatpush.msra.mxu0 %v71
    %81 = vmatpush.msra.mxu0 %v70
    %82 = vmatpush.msra.mxu0 %v69
    %83 = vmatpush.msra.mxu0 %v68
    %84 = vmatpush.msra.mxu0 %v67
    %85 = vmatpush.msra.mxu0 %v66
    %86 = vmatpush.msra.mxu0 %v65
    %87 = vmatpush.msra.mxu0 %v64
    %88 = vmatpush.msra.mxu0 %v63
    %89 = vmatpush.msra.mxu0 %v62
    %90 = vmatpush.msra.mxu0 %v61
    %91 = vmatpush.msra.mxu0 %v60
    %92 = vmatmul.f32.gmra.mxu0 %v44
    %v93 = vpop.f32.mrf.mxu0
    %v94 = vadd.f32 0.0, %v93
    %95 = vmatmul.f32.gmra.mxu0 %v45
    %v96 = vpop.f32.mrf.mxu0
    %v97 = vadd.f32 0.0, %v96
    %98 = vmatmul.f32.gmra.mxu0 %v46
    %v99 = vpop.f32.mrf.mxu0
    %v100 = vadd.f32 0.0, %v99
    %101 = vmatmul.f32.gmra.mxu0 %v47
    %v102 = vpop.f32.mrf.mxu0
    %v103 = vadd.f32 0.0, %v102
    %104 = vmatmul.f32.gmra.mxu0 %v48
    %v105 = vpop.f32.mrf.mxu0
    %v106 = vadd.f32 0.0, %v105
    %107 = vmatmul.f32.gmra.mxu0 %v49
    %v108 = vpop.f32.mrf.mxu0
    %v109 = vadd.f32 0.0, %v108
    %110 = vmatmul.f32.gmra.mxu0 %v50
    %v111 = vpop.f32.mrf.mxu0
    %v112 = vadd.f32 0.0, %v111
    %113 = vmatmul.f32.gmra.mxu0 %v51
    %v114 = vpop.f32.mrf.mxu0
    %v115 = vadd.f32 0.0, %v114
    %116 = vmatmul.f32.gmra.mxu0 %v52
    %v117 = vpop.f32.mrf.mxu0
    %v118 = vadd.f32 0.0, %v117
    %119 = vmatmul.f32.gmra.mxu0 %v53
    %v120 = vpop.f32.mrf.mxu0
    %v121 = vadd.f32 0.0, %v120
    %122 = vmatmul.f32.gmra.mxu0 %v54
    %v123 = vpop.f32.mrf.mxu0
    %v124 = vadd.f32 0.0, %v123
    %125 = vmatmul.f32.gmra.mxu0 %v55
    %v126 = vpop.f32.mrf.mxu0
    %v127 = vadd.f32 0.0, %v126
    %128 = vmatmul.f32.gmra.mxu0 %v56
    %v129 = vpop.f32.mrf.mxu0
    %v130 = vadd.f32 0.0, %v129
    %131 = vmatmul.f32.gmra.mxu0 %v57
    %v132 = vpop.f32.mrf.mxu0
    %v133 = vadd.f32 0.0, %v132
    %134 = vmatmul.f32.gmra.mxu0 %v58
    %v135 = vpop.f32.mrf.mxu0
    %v136 = vadd.f32 0.0, %v135
    %137 = vmatmul.f32.gmra.mxu0 %v59
    %v138 = vpop.f32.mrf.mxu0
    %v139 = vadd.f32 0.0, %v138
    %140 = vdwg.mxu0
    %v141 = vadd.f32 %v60, %v94
    %v142 = vadd.f32 %v61, %v97
    %v143 = vadd.f32 %v62, %v100
    %v144 = vadd.f32 %v63, %v103
    %v145 = vadd.f32 %v64, %v106
    %v146 = vadd.f32 %v65, %v109
    %v147 = vadd.f32 %v66, %v112
    %v148 = vadd.f32 %v67, %v115
    %v149 = vadd.f32 %v68, %v118
    %v150 = vadd.f32 %v69, %v121
    %v151 = vadd.f32 %v70, %v124
    %v152 = vadd.f32 %v71, %v127
    %v153 = vadd.f32 %v72, %v130
    %v154 = vadd.f32 %v73, %v133
    %v155 = vadd.f32 %v74, %v136
    %v156 = vadd.f32 %v75, %v139
    %157 = vmatpush.msra.mxu0 %v139
    %158 = vmatpush.msra.mxu0 %v136
    %159 = vmatpush.msra.mxu0 %v133
    %160 = vmatpush.msra.mxu0 %v130
    %161 = vmatpush.msra.mxu0 %v127
    %162 = vmatpush.msra.mxu0 %v124
    %163 = vmatpush.msra.mxu0 %v121
    %164 = vmatpush.msra.mxu0 %v118
    %165 = vmatpush.msra.mxu0 %v115
    %166 = vmatpush.msra.mxu0 %v112
    %167 = vmatpush.msra.mxu0 %v109
    %168 = vmatpush.msra.mxu0 %v106
    %169 = vmatpush.msra.mxu0 %v103
    %170 = vmatpush.msra.mxu0 %v100
    %171 = vmatpush.msra.mxu0 %v97
    %172 = vmatpush.msra.mxu0 %v94
    %173 = vmatmul.f32.gmra.mxu0 %v44
    %v174 = vpop.f32.mrf.mxu0
    %v175 = vadd.f32 0.0, %v174
    %176 = vmatmul.f32.gmra.mxu0 %v45
    %v177 = vpop.f32.mrf.mxu0
    %v178 = vadd.f32 0.0, %v177
    %179 = vmatmul.f32.gmra.mxu0 %v46
    %v180 = vpop.f32.mrf.mxu0
    %v181 = vadd.f32 0.0, %v180
    %182 = vmatmul.f32.gmra.mxu0 %v47
    %v183 = vpop.f32.mrf.mxu0
    %v184 = vadd.f32 0.0, %v183
    %185 = vmatmul.f32.gmra.mxu0 %v48
    %v186 = vpop.f32.mrf.mxu0
    %v187 = vadd.f32 0.0, %v186
    %188 = vmatmul.f32.gmra.mxu0 %v49
    %v189 = vpop.f32.mrf.mxu0
    %v190 = vadd.f32 0.0, %v189
    %191 = vmatmul.f32.gmra.mxu0 %v50
    %v192 = vpop.f32.mrf.mxu0
    %v193 = vadd.f32 0.0, %v192
    %194 = vmatmul.f32.gmra.mxu0 %v51
    %v195 = vpop.f32.mrf.mxu0
    %v196 = vadd.f32 0.0, %v195
    %197 = vmatmul.f32.gmra.mxu0 %v52
    %v198 = vpop.f32.mrf.mxu0
    %v199 = vadd.f32 0.0, %v198
    %200 = vmatmul.f32.gmra.mxu0 %v53
    %v201 = vpop.f32.mrf.mxu0
    %v202 = vadd.f32 0.0, %v201
    %203 = vmatmul.f32.gmra.mxu0 %v54
    %v204 = vpop.f32.mrf.mxu0
    %v205 = vadd.f32 0.0, %v204
    %206 = vmatmul.f32.gmra.mxu0 %v55
    %v207 = vpop.f32.mrf.mxu0
    %v208 = vadd.f32 0.0, %v207
    %209 = vmatmul.f32.gmra.mxu0 %v56
    %v210 = vpop.f32.mrf.mxu0
    %v211 = vadd.f32 0.0, %v210
    %212 = vmatmul.f32.gmra.mxu0 %v57
    %v213 = vpop.f32.mrf.mxu0
    %v214 = vadd.f32 0.0, %v213
    %215 = vmatmul.f32.gmra.mxu0 %v58
    %v216 = vpop.f32.mrf.mxu0
    %v217 = vadd.f32 0.0, %v216
    %218 = vmatmul.f32.gmra.mxu0 %v59
    %v219 = vpop.f32.mrf.mxu0
    %v220 = vadd.f32 0.0, %v219
    %221 = vdwg.mxu0
    %v222 = vadd.f32 %v141, %v175
    %v223 = vadd.f32 %v142, %v178
    %v224 = vadd.f32 %v143, %v181
    %v225 = vadd.f32 %v144, %v184
    %v226 = vadd.f32 %v145, %v187
    %v227 = vadd.f32 %v146, %v190
    %v228 = vadd.f32 %v147, %v193
    %v229 = vadd.f32 %v148, %v196
    %v230 = vadd.f32 %v149, %v199
    %v231 = vadd.f32 %v150, %v202
    %v232 = vadd.f32 %v151, %v205
    %v233 = vadd.f32 %v152, %v208
    %v234 = vadd.f32 %v153, %v211
    %v235 = vadd.f32 %v154, %v214
    %v236 = vadd.f32 %v155, %v217
    %v237 = vadd.f32 %v156, %v220
    %238 = vmatpush.msra.mxu0 %v220
    %239 = vmatpush.msra.mxu0 %v217
    %240 = vmatpush.msra.mxu0 %v214
    %241 = vmatpush.msra.mxu0 %v211
    %242 = vmatpush.msra.mxu0 %v208
    %243 = vmatpush.msra.mxu0 %v205
    %244 = vmatpush.msra.mxu0 %v202
    %245 = vmatpush.msra.mxu0 %v199
    %246 = vmatpush.msra.mxu0 %v196
    %247 = vmatpush.msra.mxu0 %v193
    %248 = vmatpush.msra.mxu0 %v190
    %249 = vmatpush.msra.mxu0 %v187
    %250 = vmatpush.msra.mxu0 %v184
    %251 = vmatpush.msra.mxu0 %v181
    %252 = vmatpush.msra.mxu0 %v178
    %253 = vmatpush.msra.mxu0 %v175
    %254 = vmatmul.f32.gmra.mxu0 %v44
    %v255 = vpop.f32.mrf.mxu0
    %v256 = vadd.f32 0.0, %v255
    %257 = vmatmul.f32.gmra.mxu0 %v45
    %v258 = vpop.f32.mrf.mxu0
    %v259 = vadd.f32 0.0, %v258
    %260 = vmatmul.f32.gmra.mxu0 %v46
    %v261 = vpop.f32.mrf.mxu0
    %v262 = vadd.f32 0.0, %v261
    %263 = vmatmul.f32.gmra.mxu0 %v47
    %v264 = vpop.f32.mrf.mxu0
    %v265 = vadd.f32 0.0, %v264
    %266 = vmatmul.f32.gmra.mxu0 %v48
    %v267 = vpop.f32.mrf.mxu0
    %v268 = vadd.f32 0.0, %v267
    %269 = vmatmul.f32.gmra.mxu0 %v49
    %v270 = vpop.f32.mrf.mxu0
    %v271 = vadd.f32 0.0, %v270
    %272 = vmatmul.f32.gmra.mxu0 %v50
    %v273 = vpop.f32.mrf.mxu0
    %v274 = vadd.f32 0.0, %v273
    %275 = vmatmul.f32.gmra.mxu0 %v51
    %v276 = vpop.f32.mrf.mxu0
    %v277 = vadd.f32 0.0, %v276
    %278 = vmatmul.f32.gmra.mxu0 %v52
    %v279 = vpop.f32.mrf.mxu0
    %v280 = vadd.f32 0.0, %v279
    %281 = vmatmul.f32.gmra.mxu0 %v53
    %v282 = vpop.f32.mrf.mxu0
    %v283 = vadd.f32 0.0, %v282
    %284 = vmatmul.f32.gmra.mxu0 %v54
    %v285 = vpop.f32.mrf.mxu0
    %v286 = vadd.f32 0.0, %v285
    %287 = vmatmul.f32.gmra.mxu0 %v55
    %v288 = vpop.f32.mrf.mxu0
    %v289 = vadd.f32 0.0, %v288
    %290 = vmatmul.f32.gmra.mxu0 %v56
    %v291 = vpop.f32.mrf.mxu0
    %v292 = vadd.f32 0.0, %v291
    %293 = vmatmul.f32.gmra.mxu0 %v57
    %v294 = vpop.f32.mrf.mxu0
    %v295 = vadd.f32 0.0, %v294
    %296 = vmatmul.f32.gmra.mxu0 %v58
    %v297 = vpop.f32.mrf.mxu0
    %v298 = vadd.f32 0.0, %v297
    %299 = vmatmul.f32.gmra.mxu0 %v59
    %v300 = vpop.f32.mrf.mxu0
    %v301 = vadd.f32 0.0, %v300
    %302 = vdwg.mxu0
    %v303 = vadd.f32 %v222, %v256
    %v304 = vadd.f32 %v223, %v259
    %v305 = vadd.f32 %v224, %v262
    %v306 = vadd.f32 %v225, %v265
    %v307 = vadd.f32 %v226, %v268
    %v308 = vadd.f32 %v227, %v271
    %v309 = vadd.f32 %v228, %v274
    %v310 = vadd.f32 %v229, %v277
    %v311 = vadd.f32 %v230, %v280
    %v312 = vadd.f32 %v231, %v283
    %v313 = vadd.f32 %v232, %v286
    %v314 = vadd.f32 %v233, %v289
    %v315 = vadd.f32 %v234, %v292
    %v316 = vadd.f32 %v235, %v295
    %v317 = vadd.f32 %v236, %v298
    %v318 = vadd.f32 %v237, %v301
    %v319 = vmul.f32 %v303, 0.25
    %v320 = vmul.f32 %v304, 0.25
    %v321 = vmul.f32 %v305, 0.25
    %v322 = vmul.f32 %v306, 0.25
    %v323 = vmul.f32 %v307, 0.25
    %v324 = vmul.f32 %v308, 0.25
    %v325 = vmul.f32 %v309, 0.25
    %v326 = vmul.f32 %v310, 0.25
    %v327 = vmul.f32 %v311, 0.25
    %v328 = vmul.f32 %v312, 0.25
    %v329 = vmul.f32 %v313, 0.25
    %v330 = vmul.f32 %v314, 0.25
    %v331 = vmul.f32 %v315, 0.25
    %v332 = vmul.f32 %v316, 0.25
    %v333 = vmul.f32 %v317, 0.25
    %v334 = vmul.f32 %v318, 0.25
    %335 = vst [vmem:[#allocation7] sm:$0xff] %v319
    %336 = vst [vmem:[#allocation7 + $0x8] sm:$0xff] %v320
    %337 = vst [vmem:[#allocation7 + $0x10] sm:$0xff] %v321
    %338 = vst [vmem:[#allocation7 + $0x18] sm:$0xff] %v322
    %339 = vst [vmem:[#allocation7 + $0x20] sm:$0xff] %v323
    %340 = vst [vmem:[#allocation7 + $0x28] sm:$0xff] %v324
    %341 = vst [vmem:[#allocation7 + $0x30] sm:$0xff] %v325
    %342 = vst [vmem:[#allocation7 + $0x38] sm:$0xff] %v326
    %343 = vst [vmem:[#allocation7 + $0x40] sm:$0xff] %v327
    %344 = vst [vmem:[#allocation7 + $0x48] sm:$0xff] %v328
    %345 = vst [vmem:[#allocation7 + $0x50] sm:$0xff] %v329
    %346 = vst [vmem:[#allocation7 + $0x58] sm:$0xff] %v330
    %347 = vst [vmem:[#allocation7 + $0x60] sm:$0xff] %v331
    %348 = vst [vmem:[#allocation7 + $0x68] sm:$0xff] %v332
    %349 = vst [vmem:[#allocation7 + $0x70] sm:$0xff] %v333
    %350 = vst [vmem:[#allocation7 + $0x78] sm:$0xff] %v334
    // Predicated region
    $region18: #{tpu_custom_call.1} parent=1 // pred_check
      _
    $region19: #{tpu_custom_call.1} parent=1 // pred_check_branch
      %352 = sbr.rel (0) target = $region21
    $region20: #{tpu_custom_call.1} parent=1 // pred_region
      %354 = vsyncadd [#allocation4], 0
      %s355 = sshll.u32 [#allocation7], 4
      %s356 = int_to_ptr.vmem [resolvable:$true] %s355
      %s357 = sshll.u32 %s2, 4
      %s358 = int_to_ptr.hbm [resolvable:$true] %s357
      %363 = dma.vmem_to_hbm [thread:$0]  %s356, 2048, %s358, [#allocation4], 128, 128, 8
    $region21: #{tpu_custom_call.1} parent=1 // pred_fallthru
      _
    // Predicated region
    $region22: #{tpu_custom_call.1} parent=1 // pred_check
      _
    $region23: #{tpu_custom_call.1} parent=1 // pred_check_branch
      %365 = sbr.rel (0) target = $region25
    $region24: #{tpu_custom_call.1} parent=1 // pred_region
      %367 = dma.done [#allocation4], 2048
    $region25: #{tpu_custom_call.1} parent=1 // pred_fallthru
      _
    %368 = vsyncpa [#allocation3], 1
    %369 = vsyncpa [#allocation6], 1
    %370 = vsyncpa [#allocation4], 1

</llo_original>
